<compile_context>
chip_gen: v5e
topology: v5e:2x2
jax: 0.10.0
libtpu: 0.0.40
codegen_flags: <defaults>
</compile_context>

<pallas_src>
import numpy as np
import jax
import jax.numpy as jnp
from jax.experimental import pallas as pl
from jax.experimental.pallas import tpu as pltpu


def get_frequency_modes(seq_len, modes=64, mode_select_method='random'):
    modes = min(modes, seq_len // 2)
    if mode_select_method == 'random':
        index = list(range(0, seq_len // 2))
        np.random.shuffle(index)
        index = index[:modes]
        index.sort()
    else:
        index = list(range(0, modes))
    return index


# ----------------------------------------------------------------------------
# Pallas kernel: packed-complex per-mode matmul.
#   q_ref: (Mt*H, B, 2*Ei)   bf16   ([qr | qi] along the last dim)
#   w_ref: (Mt*H, 2*Ei, 2*Eo) bf16  ([[wr, wi], [-wi, wr]])
#   y_ref: (Mt*H, B, 2*Eo)   f32    ([yr | yi])
# One batched MXU dot_general per grid step (modes*heads folded into the batch dim).
# ----------------------------------------------------------------------------
def _fourier_modes_kernel(q_ref, w_ref, y_ref):
    y_ref[...] = jnp.einsum('gbi,gio->gbo', q_ref[...], w_ref[...],
                            preferred_element_type=jnp.float32)


# Double-buffered per-step working-set target and the matching scoped-VMEM limit.
# 48 MiB stays safely under v7x's 64 MiB physical VMEM (v5e/v6e have 128 MiB).
_VMEM_BUDGET_BYTES = 32 * 1024 * 1024
_VMEM_LIMIT_BYTES = 48 * 1024 * 1024


def _choose_mode_tile(n_modes, H, B, e_in, e_out):
    # Bytes of one mode's double-buffered working set:
    #   bf16 q block + bf16 w block + f32 out block, x2 pipeline buffers each.
    per_mode = 2 * ((H * B * 2 * e_in) * 2 +
                    (H * 2 * e_in * 2 * e_out) * 2 +
                    (H * B * 2 * e_out) * 4)
    mt_cap = max(1, _VMEM_BUDGET_BYTES // per_mode)
    # Keep at least 2 grid steps when possible (v7x has 2 TensorCores per chip and a
    # single-step "parallel" grid would idle one), then balance work across steps.
    steps = max(2 if n_modes > 1 else 1, -(-n_modes // mt_cap))
    return -(-n_modes // steps)


def fourier_modes_matmul(q_packed, w_packed, mode_tile):
    """q_packed: (M, H, B, 2Ei) bf16; w_packed: (M, H, 2Ei, 2Eo) bf16, M % mode_tile == 0.
    Returns (M, H, B, 2Eo) f32 with out[m, h] = q[m, h] @ w[m, h]."""
    M, H, B, Ei2 = q_packed.shape
    Eo2 = w_packed.shape[-1]
    G = mode_tile * H
    # Merge (mode, head) into one leading batch dim (free metadata reshape in XLA);
    # the last two dims of every block equal the full array dims -> layout-legal specs.
    q_flat = q_packed.reshape(M * H, B, Ei2)
    w_flat = w_packed.reshape(M * H, Ei2, Eo2)
    y_flat = pl.pallas_call(
        _fourier_modes_kernel,
        grid=(M // mode_tile,),
        in_specs=[pl.BlockSpec((G, B, Ei2), lambda m: (m, 0, 0)),
                  pl.BlockSpec((G, Ei2, Eo2), lambda m: (m, 0, 0))],
        out_specs=pl.BlockSpec((G, B, Eo2), lambda m: (m, 0, 0)),
        out_shape=jax.ShapeDtypeStruct((M * H, B, Eo2), jnp.float32),
        compiler_params=pltpu.CompilerParams(
            dimension_semantics=("parallel",),
            vmem_limit_bytes=_VMEM_LIMIT_BYTES),
    )(q_flat, w_flat)
    return y_flat.reshape(M, H, B, Eo2)


class FourierBlockPallas:
    def __init__(self, in_channels, out_channels, seq_len, modes=0,
                 mode_select_method='random', key=None):
        self.index_q = get_frequency_modes(seq_len, modes=modes,
                                           mode_select_method=mode_select_method)
        self.e_in = in_channels // 8
        self.e_out = out_channels // 8
        scale = 1.0 / (in_channels * out_channels)
        M = len(self.index_q)
        k1, k2 = jax.random.split(key)
        # torch.rand(..., dtype=torch.cfloat): uniform [0,1) real & imag parts.
        self.w_re = scale * jax.random.uniform(
            k1, (8, self.e_in, self.e_out, M), dtype=jnp.float32)
        self.w_im = scale * jax.random.uniform(
            k2, (8, self.e_in, self.e_out, M), dtype=jnp.float32)
        # Precompute the packed complex weights once (indices are static):
        #   W_packed[m, h] = [[wr, wi], [-wi, wr]]  (2Ei, 2Eo)
        # so that  [qr | qi] @ W_packed = [qr@wr - qi@wi | qr@wi + qi@wr].
        wr = jnp.transpose(self.w_re, (3, 0, 1, 2))   # (M, H, Ei, Eo)
        wi = jnp.transpose(self.w_im, (3, 0, 1, 2))
        top = jnp.concatenate([wr, wi], axis=-1)      # (M, H, Ei, 2Eo)
        bot = jnp.concatenate([-wi, wr], axis=-1)     # (M, H, Ei, 2Eo)
        self.w_packed = jnp.concatenate([top, bot], axis=-2).astype(jnp.bfloat16)

    def __call__(self, q, k=None, v=None, mask=None):
        B, L, H, E = q.shape
        Lf = L // 2 + 1
        _q = jnp.transpose(q, (0, 2, 3, 1))                  # (B, H, E, L)
        # TODO(synk): rfft/irfft have no Pallas TPU equivalent; they stay in jnp/XLA.
        Q = jnp.fft.rfft(_q, axis=-1)                        # (B, H, E, Lf) complex64

        # Static index bookkeeping (mirrors the torch loop + skip condition).
        pairs = [(i, iq) for i, iq in enumerate(self.index_q) if i < Lf and iq < Lf]
        if not pairs:
            # No valid mode: torch leaves Y all-zero -> irfft is all-zero.
            return jnp.zeros((B, L, H, self.e_out), dtype=jnp.float32), None
        out_pos = np.array([i for i, _ in pairs], dtype=np.int32)
        in_pos = np.array([iq for _, iq in pairs], dtype=np.int32)
        Mv = len(pairs)

        # Gather selected modes and pack real/imag -> (Mv, H, B, 2Ei) bf16.
        Qg = jnp.transpose(Q[..., in_pos], (3, 1, 0, 2))     # (Mv, H, B, E) complex
        q_packed = jnp.concatenate([jnp.real(Qg), jnp.imag(Qg)],
                                   axis=-1).astype(jnp.bfloat16)

        if np.array_equal(out_pos, np.arange(self.w_packed.shape[0])):
            w_sel = self.w_packed                            # common case: all modes kept
        else:
            w_sel = self.w_packed[out_pos]

        # Tile modes per grid step (>=2 steps for v7x megacore); pad with zero modes.
        Mt = _choose_mode_tile(Mv, H, B, self.e_in, self.e_out)
        M_pad = ((Mv + Mt - 1) // Mt) * Mt
        if M_pad != Mv:
            pad = ((0, M_pad - Mv), (0, 0), (0, 0), (0, 0))
            q_packed = jnp.pad(q_packed, pad)
            w_sel = jnp.pad(w_sel, pad)

        y_packed = fourier_modes_matmul(q_packed, w_sel, Mt)  # (M_pad, H, B, 2Eo) f32
        y_packed = y_packed[:Mv]

        Eo = self.e_out
        Ysel = jax.lax.complex(y_packed[..., :Eo], y_packed[..., Eo:])  # (Mv, H, B, Eo)
        Ysel = jnp.transpose(Ysel, (2, 1, 3, 0))             # (B, H, Eo, Mv)
        if np.array_equal(out_pos, np.arange(Mv)):
            # Common FEDformer case ('lowest' modes): pad instead of scatter.
            Y = jnp.pad(Ysel, ((0, 0), (0, 0), (0, 0), (0, Lf - Mv)))
        else:
            Y = jnp.zeros((B, H, Eo, Lf), dtype=jnp.complex64)
            Y = Y.at[..., out_pos].set(Ysel)

        y = jnp.fft.irfft(Y, n=L, axis=-1)                   # (B, H, Eo, L) float32
        y = jnp.transpose(y, (0, 3, 1, 2))                   # (B, L, H, Eo)
        return y, None


if __name__ == "__main__":
    # Small shapes implied by the forward: H must be 8 (weights leading dim),
    # E = in_channels // 8, in_channels == out_channels.
    B, L, H, E = 2, 16, 8, 4
    in_channels = out_channels = H * E  # 32

    key = jax.random.PRNGKey(0)
    kq, kw = jax.random.split(key)
    q = jax.random.normal(kq, (B, L, H, E), dtype=jnp.float32)

    block = FourierBlockPallas(in_channels, out_channels, seq_len=L,
                               modes=8, mode_select_method='lowest', key=kw)

    y, attn = block(q, None, None, None)
    y = jax.block_until_ready(y)
    assert y.shape == (B, L, H, E)
    assert attn is None

    # Pure-JAX f32 reference of the exact torch semantics for a correctness check.
    _q = jnp.transpose(q, (0, 2, 3, 1))
    Q = jnp.fft.rfft(_q, axis=-1)
    Lf = L // 2 + 1
    W = block.w_re + 1j * block.w_im
    Yref = jnp.zeros((B, H, E, Lf), dtype=jnp.complex64)
    for i, iq in enumerate(block.index_q):
        if i >= Lf or iq >= Lf:
            continue
        QW = jnp.einsum('bhi,hio->bho', Q[:, :, :, iq], W[:, :, :, i])
        Yref = Yref.at[:, :, :, i].set(QW)
    yref = jnp.transpose(jnp.fft.irfft(Yref, n=L, axis=-1), (0, 3, 1, 2))

    # Tolerance loosened vs. a pure-f32 path because kernel inputs are bf16
    # (f32 accumulation); errors are O(1e-4) absolute at these magnitudes.
    np.testing.assert_allclose(np.asarray(y), np.asarray(yref), rtol=5e-2, atol=5e-4)
    print("KERNEL_OK")
</pallas_src>

<mosaic_0001>
module attributes {stable_mosaic.version = 11 : i64} {
  func.func @_fourier_modes_kernel(%arg0: i32, %arg1: memref<32x2x8xbf16, #tpu.memory_space<vmem>>, %arg2: memref<32x8x8xbf16, #tpu.memory_space<vmem>>, %arg3: memref<32x2x8xf32, #tpu.memory_space<vmem>>) attributes {dimension_semantics = [#tpu.dimension_semantics<parallel>], iteration_bounds = array<i64: 2>, scalar_prefetch = 0 : i64, scratch_operands = 0 : i64, tpu.core_type = #tpu.core_type<tc>, window_params = [{transform_indices = @transform_0, window_bounds = array<i64: 32, 2, 8>}, {transform_indices = @transform_1, window_bounds = array<i64: 32, 8, 8>}, {transform_indices = @transform_2, window_bounds = array<i64: 32, 2, 8>}]} {
    %c0 = arith.constant 0 : index
    %c0_0 = arith.constant 0 : index
    %c0_1 = arith.constant 0 : index
    %0 = vector.load %arg1[%c0, %c0_0, %c0_1] : memref<32x2x8xbf16, #tpu.memory_space<vmem>>, vector<32x2x8xbf16>
    %c0_2 = arith.constant 0 : index
    %c0_3 = arith.constant 0 : index
    %c0_4 = arith.constant 0 : index
    %1 = vector.load %arg2[%c0_2, %c0_3, %c0_4] : memref<32x8x8xbf16, #tpu.memory_space<vmem>>, vector<32x8x8xbf16>
    "tpu.trace_start"() <{level = 10 : i32, message = "gbi,gio->gbo"}> : () -> ()
    %cst = arith.constant dense<0.000000e+00> : vector<32x2x8xf32>
    %2 = tpu.matmul %0, %1, %cst {dimension_numbers = #tpu.dot_dimension_numbers<[2], [1], [1], [2], [0, 0, 0, 1, 1, 2], [0], [0]>} : vector<32x2x8xbf16>, vector<32x8x8xbf16>, vector<32x2x8xf32> -> vector<32x2x8xf32>
    "tpu.trace_stop"() : () -> ()
    %c0_5 = arith.constant 0 : index
    %c0_6 = arith.constant 0 : index
    %c0_7 = arith.constant 0 : index
    %3 = vector.load %arg3[%c0_5, %c0_6, %c0_7] : memref<32x2x8xf32, #tpu.memory_space<vmem>>, vector<32x2x8xf32>
    tpu.vector_store %arg3[%c0_5, %c0_6, %c0_7], %2 {strides = array<i32>} : memref<32x2x8xf32, #tpu.memory_space<vmem>>, vector<32x2x8xf32>,
    return
  }
  func.func @transform_0(%arg0: i32) -> (i32, i32, i32) {
    %c0_i32 = arith.constant 0 : i32
    %c0_i32_0 = arith.constant 0 : i32
    %c0_i32_1 = arith.constant 0 : i32
    return %arg0, %c0_i32, %c0_i32_0 : i32, i32, i32
  }
  func.func @transform_1(%arg0: i32) -> (i32, i32, i32) {
    %c0_i32 = arith.constant 0 : i32
    %c0_i32_0 = arith.constant 0 : i32
    %c0_i32_1 = arith.constant 0 : i32
    return %arg0, %c0_i32, %c0_i32_0 : i32, i32, i32
  }
  func.func @transform_2(%arg0: i32) -> (i32, i32, i32) {
    %c0_i32 = arith.constant 0 : i32
    %c0_i32_0 = arith.constant 0 : i32
    %c0_i32_1 = arith.constant 0 : i32
    return %arg0, %c0_i32, %c0_i32_0 : i32, i32, i32
  }
}

</mosaic_0001>

<llo_original>
// kernel: tpu_custom_call.1
$region0: #{tpu_custom_call.1}
  #allocation0 [shape = 'u32[]', space=smem, size = 0x4, offset = 0x4, fixed_abs, tag = 'smem constant byte address 0x4 - core index']
  #allocation1 [shape = 'u32[72,128]{1,0:T(1,128)}', space=vmem, size = 0x9000, scoped, tag = 'internal scratch']
  %s0 = inlined_call_operand.vmem [shape: bf16[64,2,8], index: 0, kind: input, shape index: {}]
  %s1 = inlined_call_operand.vmem [shape: bf16[64,8,8], index: 1, kind: input, shape index: {}]
  %s2 = inlined_call_operand.vmem [shape: f32[64,2,8], index: 2, kind: output, shape index: {}]
  %s3 = sld [smem:[#allocation0]]
  $region41: #{tpu_custom_call.1} parent=0
    _
  %s5 = ssub.s32 1, %s3
  %s6 = scalar_select 0, %s5, %s3
  loop: start=0, step=1, limit=4
  $region2: #{tpu_custom_call.1} parent=0 // loop_pre_header
    _
  $region3: #{tpu_custom_call.1} parent=0 // loop_header
    %s8 = sphi 0, %s12
    %p9 = scmp.ge.s32.totalorder %s8, 4
    %s18 = sphi 0, %s20
    %s21 = sphi 0, %s18
    %s22 = sphi 0, %s21
    %s38 = sphi 0, %s22
    %s44 = sphi 0, %s46
    %s47 = sphi 0, %s44
    %s48 = sphi 0, %s47
    %s64 = sphi 0, %s48
    %s70 = sphi 0, %s72
    %s73 = sphi 0, %s70
    %s74 = sphi 0, %s73
    %s90 = sphi 0, %s74
  $region4: #{tpu_custom_call.1} parent=0 // loop_header_branch
    %11 = sbr.rel (%p9) target = $region8
  $region5: #{tpu_custom_call.1} parent=0 // loop_body
    %s13 = ssub.s32 %s8, 1
    %s14 = ssub.s32 %s8, 2
    %s15 = sadd.s32 %s8, 1
    %s16 = ssub.s32 %s8, %s15
    %p17 = scmp.eq.s32.totalorder %s16, 0
    %s19 = sadd.s32 %s18, 1
    %s20 = scalar_select %p17, %s18, %s19
    %p23 = pneg %p17
    %p24 = scmp.eq.s32.totalorder %s8, 1
    %p25 = por %p23, %p24
    %p26 = scmp.ne.s32.totalorder %s18, %s21
    %p27 = scmp.eq.s32.totalorder %s8, 0
    %p28 = por %p26, %p27
    %p29 = scmp.ne.s32.totalorder %s18, %s21
    %p30 = scmp.eq.s32.totalorder %s13, 1
    %p31 = por %p29, %p30
    %p32 = scmp.ne.s32.totalorder %s21, %s22
    %p33 = scmp.eq.s32.totalorder %s13, 0
    %p34 = por %p32, %p33
    %p35 = scmp.ne.s32.totalorder %s21, %s22
    %p36 = scmp.eq.s32.totalorder %s14, 1
    %p37 = por %p35, %p36
    %p39 = scmp.ne.s32.totalorder %s22, %s38
    %p40 = scmp.eq.s32.totalorder %s14, 0
    %p41 = por %p39, %p40
    %s42 = ssub.s32 %s8, %s15
    %p43 = scmp.eq.s32.totalorder %s42, 0
    %s45 = sadd.s32 %s44, 1
    %s46 = scalar_select %p43, %s44, %s45
    %p49 = pneg %p43
    %p50 = scmp.eq.s32.totalorder %s8, 1
    %p51 = por %p49, %p50
    %p52 = scmp.ne.s32.totalorder %s44, %s47
    %p53 = scmp.eq.s32.totalorder %s8, 0
    %p54 = por %p52, %p53
    %p55 = scmp.ne.s32.totalorder %s44, %s47
    %p56 = scmp.eq.s32.totalorder %s13, 1
    %p57 = por %p55, %p56
    %p58 = scmp.ne.s32.totalorder %s47, %s48
    %p59 = scmp.eq.s32.totalorder %s13, 0
    %p60 = por %p58, %p59
    %p61 = scmp.ne.s32.totalorder %s47, %s48
    %p62 = scmp.eq.s32.totalorder %s14, 1
    %p63 = por %p61, %p62
    %p65 = scmp.ne.s32.totalorder %s48, %s64
    %p66 = scmp.eq.s32.totalorder %s14, 0
    %p67 = por %p65, %p66
    %s68 = ssub.s32 %s8, %s15
    %p69 = scmp.eq.s32.totalorder %s68, 0
    %s71 = sadd.s32 %s70, 1
    %s72 = scalar_select %p69, %s70, %s71
    %p75 = pneg %p69
    %p76 = scmp.eq.s32.totalorder %s8, 1
    %p77 = por %p75, %p76
    %p78 = scmp.ne.s32.totalorder %s70, %s73
    %p79 = scmp.eq.s32.totalorder %s8, 0
    %p80 = por %p78, %p79
    %p81 = scmp.ne.s32.totalorder %s70, %s73
    %p82 = scmp.eq.s32.totalorder %s13, 1
    %p83 = por %p81, %p82
    %p84 = scmp.ne.s32.totalorder %s73, %s74
    %p85 = scmp.eq.s32.totalorder %s13, 0
    %p86 = por %p84, %p85
    %p87 = scmp.ne.s32.totalorder %s73, %s74
    %p88 = scmp.eq.s32.totalorder %s14, 1
    %p89 = por %p87, %p88
    %p91 = scmp.ne.s32.totalorder %s74, %s90
    %p92 = scmp.eq.s32.totalorder %s14, 0
    %p93 = por %p91, %p92
    %p94 = scmp.le.s32.totalorder 1, %s8
    %p95 = scmp.lt.s32.totalorder %s8, 3
    %p96 = pnand %p94, %p95
    %p97 = pneg %p96
    // Predicated region
    $region9: #{tpu_custom_call.1} parent=5 // pred_check
      _
    $region10: #{tpu_custom_call.1} parent=5 // pred_check_branch
      %99 = sbr.rel (%p96) target = $region12
    $region11: #{tpu_custom_call.1} parent=5 // pred_region
      %s100 = ssub.s32 %s8, 1
    $region12: #{tpu_custom_call.1} parent=5 // pred_fallthru
      _
    %p101 = scmp.lt.s32.totalorder %s8, 2
    // Predicated region
    $region13: #{tpu_custom_call.1} parent=5 // pred_check
      %p102 = pneg %p101
    $region14: #{tpu_custom_call.1} parent=5 // pred_check_branch
      %104 = sbr.rel (%p102) target = $region16
    $region15: #{tpu_custom_call.1} parent=5 // pred_region
      // Predicated region
      $region17: #{tpu_custom_call.1} parent=15 // pred_check
        %p105 = pneg %p28
      $region18: #{tpu_custom_call.1} parent=15 // pred_check_branch
        %107 = sbr.rel (%p105) target = $region20
      $region19: #{tpu_custom_call.1} parent=15 // pred_region
        %s108 = smul.u32 32, %s8
        %p109 = scmp.lt.s32.totalorder %s108, 63
        %s110 = scalar_select %p109, %s108, 63
        %s111 = scalar_lea.vmem %s0, %s110
        %s112 = smul.u32 32, %s8
      $region20: #{tpu_custom_call.1} parent=15 // pred_fallthru
        _
      // Predicated region
      $region21: #{tpu_custom_call.1} parent=15 // pred_check
        %p113 = pneg %p54
      $region22: #{tpu_custom_call.1} parent=15 // pred_check_branch
        %115 = sbr.rel (%p113) target = $region24
      $region23: #{tpu_custom_call.1} parent=15 // pred_region
        %s116 = smul.u32 32, %s8
        %p117 = scmp.lt.s32.totalorder %s116, 63
        %s118 = scalar_select %p117, %s116, 63
        %s119 = smul.addr %s118, 4
        %s120 = scalar_lea.vmem %s1, %s119
        %s121 = smul.u32 32, %s8
      $region24: #{tpu_custom_call.1} parent=15 // pred_fallthru
        _
    $region16: #{tpu_custom_call.1} parent=5 // pred_fallthru
      _
    %p122 = scmp.le.s32.totalorder 1, %s8
    %p123 = scmp.lt.s32.totalorder %s8, 3
    %p124 = pnand %p122, %p123
    %p125 = pneg %p124
    // Predicated region
    $region25: #{tpu_custom_call.1} parent=5 // pred_check
      _
    $region26: #{tpu_custom_call.1} parent=5 // pred_check_branch
      %127 = sbr.rel (%p124) target = $region28
    $region27: #{tpu_custom_call.1} parent=5 // pred_region
      %s128 = ssub.s32 %s8, 1
      %s129 = smul.u32 32, %s13
      %p130 = scmp.lt.s32.totalorder %s129, 63
      %s131 = scalar_select %p130, %s129, 63
      %s132 = scalar_lea.vmem %s0, %s131
      %p133 = pneg %p34
      %p134 = pneg %p31
      %s135 = smul.u32 32, %s13
      %p136 = scmp.lt.s32.totalorder %s135, 63
      %s137 = scalar_select %p136, %s135, 63
      %s138 = smul.addr %s137, 4
      %s139 = scalar_lea.vmem %s1, %s138
      %p140 = pneg %p60
      %p141 = pneg %p57
      %p142 = pneg %p86
      %p143 = pneg %p83
      %s144 = smul.u32 32, %s13
      %p145 = scmp.lt.s32.totalorder %s144, 63
      %s146 = scalar_select %p145, %s144, 63
      %s147 = smul.addr %s146, 2
      %s148 = scalar_lea.vmem %s2, %s147
      %s149 = smul.u32 32, %s13
      %p150 = scmp.lt.s32.totalorder %s149, 63
      %s151 = scalar_select %p150, %s149, 63
      %s152 = scalar_lea.vmem %s0, %s151
      %s153 = smul.u32 32, %s13
      %s154 = smul.u32 32, %s13
      %p155 = scmp.lt.s32.totalorder %s154, 63
      %s156 = scalar_select %p155, %s154, 63
      %s157 = smul.addr %s156, 4
      %s158 = scalar_lea.vmem %s1, %s157
      %s159 = smul.u32 32, %s13
      %s160 = smul.u32 32, %s13
      %p161 = scmp.lt.s32.totalorder %s160, 63
      %s162 = scalar_select %p161, %s160, 63
      %s163 = smul.addr %s162, 2
      %s164 = scalar_lea.vmem %s2, %s163
      %s165 = smul.u32 32, %s13
      %v167 = vld [vmem:[%s152] sm:$0x1]
      %v168 = vld [vmem:[%s152 + $0x1] sm:$0x1]
      %v169 = vld [vmem:[%s152 + $0x2] sm:$0x1]
      %v170 = vld [vmem:[%s152 + $0x3] sm:$0x1]
      %v171 = vld [vmem:[%s152 + $0x4] sm:$0x1]
      %v172 = vld [vmem:[%s152 + $0x5] sm:$0x1]
      %v173 = vld [vmem:[%s152 + $0x6] sm:$0x1]
      %v174 = vld [vmem:[%s152 + $0x7] sm:$0x1]
      %v175 = vld [vmem:[%s152 + $0x8] sm:$0x1]
      %v176 = vld [vmem:[%s152 + $0x9] sm:$0x1]
      %v177 = vld [vmem:[%s152 + $0xa] sm:$0x1]
      %v178 = vld [vmem:[%s152 + $0xb] sm:$0x1]
      %v179 = vld [vmem:[%s152 + $0xc] sm:$0x1]
      %v180 = vld [vmem:[%s152 + $0xd] sm:$0x1]
      %v181 = vld [vmem:[%s152 + $0xe] sm:$0x1]
      %v182 = vld [vmem:[%s152 + $0xf] sm:$0x1]
      %v183 = vld [vmem:[%s152 + $0x10] sm:$0x1]
      %v184 = vld [vmem:[%s152 + $0x11] sm:$0x1]
      %v185 = vld [vmem:[%s152 + $0x12] sm:$0x1]
      %v186 = vld [vmem:[%s152 + $0x13] sm:$0x1]
      %v187 = vld [vmem:[%s152 + $0x14] sm:$0x1]
      %v188 = vld [vmem:[%s152 + $0x15] sm:$0x1]
      %v189 = vld [vmem:[%s152 + $0x16] sm:$0x1]
      %v190 = vld [vmem:[%s152 + $0x17] sm:$0x1]
      %v191 = vld [vmem:[%s152 + $0x18] sm:$0x1]
      %v192 = vld [vmem:[%s152 + $0x19] sm:$0x1]
      %v193 = vld [vmem:[%s152 + $0x1a] sm:$0x1]
      %v194 = vld [vmem:[%s152 + $0x1b] sm:$0x1]
      %v195 = vld [vmem:[%s152 + $0x1c] sm:$0x1]
      %v196 = vld [vmem:[%s152 + $0x1d] sm:$0x1]
      %v197 = vld [vmem:[%s152 + $0x1e] sm:$0x1]
      %v198 = vld [vmem:[%s152 + $0x1f] sm:$0x1]
      %v199 = vld [vmem:[%s158] sm:$0xf]
      %v200 = vld [vmem:[%s158 + $0x4] sm:$0xf]
      %v201 = vld [vmem:[%s158 + $0x8] sm:$0xf]
      %v202 = vld [vmem:[%s158 + $0xc] sm:$0xf]
      %v203 = vld [vmem:[%s158 + $0x10] sm:$0xf]
      %v204 = vld [vmem:[%s158 + $0x14] sm:$0xf]
      %v205 = vld [vmem:[%s158 + $0x18] sm:$0xf]
      %v206 = vld [vmem:[%s158 + $0x1c] sm:$0xf]
      %v207 = vld [vmem:[%s158 + $0x20] sm:$0xf]
      %v208 = vld [vmem:[%s158 + $0x24] sm:$0xf]
      %v209 = vld [vmem:[%s158 + $0x28] sm:$0xf]
      %v210 = vld [vmem:[%s158 + $0x2c] sm:$0xf]
      %v211 = vld [vmem:[%s158 + $0x30] sm:$0xf]
      %v212 = vld [vmem:[%s158 + $0x34] sm:$0xf]
      %v213 = vld [vmem:[%s158 + $0x38] sm:$0xf]
      %v214 = vld [vmem:[%s158 + $0x3c] sm:$0xf]
      %v215 = vld [vmem:[%s158 + $0x40] sm:$0xf]
      %v216 = vld [vmem:[%s158 + $0x44] sm:$0xf]
      %v217 = vld [vmem:[%s158 + $0x48] sm:$0xf]
      %v218 = vld [vmem:[%s158 + $0x4c] sm:$0xf]
      %v219 = vld [vmem:[%s158 + $0x50] sm:$0xf]
      %v220 = vld [vmem:[%s158 + $0x54] sm:$0xf]
      %v221 = vld [vmem:[%s158 + $0x58] sm:$0xf]
      %v222 = vld [vmem:[%s158 + $0x5c] sm:$0xf]
      %v223 = vld [vmem:[%s158 + $0x60] sm:$0xf]
      %v224 = vld [vmem:[%s158 + $0x64] sm:$0xf]
      %v225 = vld [vmem:[%s158 + $0x68] sm:$0xf]
      %v226 = vld [vmem:[%s158 + $0x6c] sm:$0xf]
      %v227 = vld [vmem:[%s158 + $0x70] sm:$0xf]
      %v228 = vld [vmem:[%s158 + $0x74] sm:$0xf]
      %v229 = vld [vmem:[%s158 + $0x78] sm:$0xf]
      %v230 = vld [vmem:[%s158 + $0x7c] sm:$0xf]
      %vm231 = vcmask 64512
      %v233 = vsel %vm231, %v167, 0
      %vm235 = vcmask 1043456
      %v237 = vsel %vm235, %v199, 0
      %239 = vmatpush.bf16.msra.mxu0 0
      %240 = vmatpush.bf16.msra.mxu0 0
      %241 = vmatpush.bf16.msra.mxu0 0
      %242 = vmatpush.bf16.msra.mxu0 0
      %243 = vmatpush.bf16.msra.mxu0 0
      %244 = vmatpush.bf16.msra.mxu0 0
      %245 = vmatpush.bf16.msra.mxu0 0
      %246 = vmatpush.bf16.msra.mxu0 %v237
      %247 = vmatmul.bf16.gmra.mxu0 %v233
      %v248 = vpop.f32.mrf.mxu0
      %v249 = vadd.f32 0.0, %v248
      %v250 = vpop.f32.mrf.mxu0
      %251 = vdwg.mxu0
      %v253 = vsel %vm231, %v168, 0
      %v256 = vsel %vm235, %v200, 0
      %258 = vmatpush.bf16.msra.mxu0 0
      %259 = vmatpush.bf16.msra.mxu0 0
      %260 = vmatpush.bf16.msra.mxu0 0
      %261 = vmatpush.bf16.msra.mxu0 0
      %262 = vmatpush.bf16.msra.mxu0 0
      %263 = vmatpush.bf16.msra.mxu0 0
      %264 = vmatpush.bf16.msra.mxu0 0
      %265 = vmatpush.bf16.msra.mxu0 %v256
      %266 = vmatmul.bf16.gmra.mxu0 %v253
      %v267 = vpop.f32.mrf.mxu0
      %v268 = vadd.f32 0.0, %v267
      %v269 = vpop.f32.mrf.mxu0
      %270 = vdwg.mxu0
      %v272 = vsel %vm231, %v169, 0
      %v275 = vsel %vm235, %v201, 0
      %277 = vmatpush.bf16.msra.mxu0 0
      %278 = vmatpush.bf16.msra.mxu0 0
      %279 = vmatpush.bf16.msra.mxu0 0
      %280 = vmatpush.bf16.msra.mxu0 0
      %281 = vmatpush.bf16.msra.mxu0 0
      %282 = vmatpush.bf16.msra.mxu0 0
      %283 = vmatpush.bf16.msra.mxu0 0
      %284 = vmatpush.bf16.msra.mxu0 %v275
      %285 = vmatmul.bf16.gmra.mxu0 %v272
      %v286 = vpop.f32.mrf.mxu0
      %v287 = vadd.f32 0.0, %v286
      %v288 = vpop.f32.mrf.mxu0
      %289 = vdwg.mxu0
      %v291 = vsel %vm231, %v170, 0
      %v294 = vsel %vm235, %v202, 0
      %296 = vmatpush.bf16.msra.mxu0 0
      %297 = vmatpush.bf16.msra.mxu0 0
      %298 = vmatpush.bf16.msra.mxu0 0
      %299 = vmatpush.bf16.msra.mxu0 0
      %300 = vmatpush.bf16.msra.mxu0 0
      %301 = vmatpush.bf16.msra.mxu0 0
      %302 = vmatpush.bf16.msra.mxu0 0
      %303 = vmatpush.bf16.msra.mxu0 %v294
      %304 = vmatmul.bf16.gmra.mxu0 %v291
      %v305 = vpop.f32.mrf.mxu0
      %v306 = vadd.f32 0.0, %v305
      %v307 = vpop.f32.mrf.mxu0
      %308 = vdwg.mxu0
      %v310 = vsel %vm231, %v171, 0
      %v313 = vsel %vm235, %v203, 0
      %315 = vmatpush.bf16.msra.mxu0 0
      %316 = vmatpush.bf16.msra.mxu0 0
      %317 = vmatpush.bf16.msra.mxu0 0
      %318 = vmatpush.bf16.msra.mxu0 0
      %319 = vmatpush.bf16.msra.mxu0 0
      %320 = vmatpush.bf16.msra.mxu0 0
      %321 = vmatpush.bf16.msra.mxu0 0
      %322 = vmatpush.bf16.msra.mxu0 %v313
      %323 = vmatmul.bf16.gmra.mxu0 %v310
      %v324 = vpop.f32.mrf.mxu0
      %v325 = vadd.f32 0.0, %v324
      %v326 = vpop.f32.mrf.mxu0
      %327 = vdwg.mxu0
      %v329 = vsel %vm231, %v172, 0
      %v332 = vsel %vm235, %v204, 0
      %334 = vmatpush.bf16.msra.mxu0 0
      %335 = vmatpush.bf16.msra.mxu0 0
      %336 = vmatpush.bf16.msra.mxu0 0
      %337 = vmatpush.bf16.msra.mxu0 0
      %338 = vmatpush.bf16.msra.mxu0 0
      %339 = vmatpush.bf16.msra.mxu0 0
      %340 = vmatpush.bf16.msra.mxu0 0
      %341 = vmatpush.bf16.msra.mxu0 %v332
      %342 = vmatmul.bf16.gmra.mxu0 %v329
      %v343 = vpop.f32.mrf.mxu0
      %v344 = vadd.f32 0.0, %v343
      %v345 = vpop.f32.mrf.mxu0
      %346 = vdwg.mxu0
      %v348 = vsel %vm231, %v173, 0
      %v351 = vsel %vm235, %v205, 0
      %353 = vmatpush.bf16.msra.mxu0 0
      %354 = vmatpush.bf16.msra.mxu0 0
      %355 = vmatpush.bf16.msra.mxu0 0
      %356 = vmatpush.bf16.msra.mxu0 0
      %357 = vmatpush.bf16.msra.mxu0 0
      %358 = vmatpush.bf16.msra.mxu0 0
      %359 = vmatpush.bf16.msra.mxu0 0
      %360 = vmatpush.bf16.msra.mxu0 %v351
      %361 = vmatmul.bf16.gmra.mxu0 %v348
      %v362 = vpop.f32.mrf.mxu0
      %v363 = vadd.f32 0.0, %v362
      %v364 = vpop.f32.mrf.mxu0
      %365 = vdwg.mxu0
      %v367 = vsel %vm231, %v174, 0
      %v370 = vsel %vm235, %v206, 0
      %372 = vmatpush.bf16.msra.mxu0 0
      %373 = vmatpush.bf16.msra.mxu0 0
      %374 = vmatpush.bf16.msra.mxu0 0
      %375 = vmatpush.bf16.msra.mxu0 0
      %376 = vmatpush.bf16.msra.mxu0 0
      %377 = vmatpush.bf16.msra.mxu0 0
      %378 = vmatpush.bf16.msra.mxu0 0
      %379 = vmatpush.bf16.msra.mxu0 %v370
      %380 = vmatmul.bf16.gmra.mxu0 %v367
      %v381 = vpop.f32.mrf.mxu0
      %v382 = vadd.f32 0.0, %v381
      %v383 = vpop.f32.mrf.mxu0
      %384 = vdwg.mxu0
      %v386 = vsel %vm231, %v175, 0
      %v389 = vsel %vm235, %v207, 0
      %391 = vmatpush.bf16.msra.mxu0 0
      %392 = vmatpush.bf16.msra.mxu0 0
      %393 = vmatpush.bf16.msra.mxu0 0
      %394 = vmatpush.bf16.msra.mxu0 0
      %395 = vmatpush.bf16.msra.mxu0 0
      %396 = vmatpush.bf16.msra.mxu0 0
      %397 = vmatpush.bf16.msra.mxu0 0
      %398 = vmatpush.bf16.msra.mxu0 %v389
      %399 = vmatmul.bf16.gmra.mxu0 %v386
      %v400 = vpop.f32.mrf.mxu0
      %v401 = vadd.f32 0.0, %v400
      %v402 = vpop.f32.mrf.mxu0
      %403 = vdwg.mxu0
      %v405 = vsel %vm231, %v176, 0
      %v408 = vsel %vm235, %v208, 0
      %410 = vmatpush.bf16.msra.mxu0 0
      %411 = vmatpush.bf16.msra.mxu0 0
      %412 = vmatpush.bf16.msra.mxu0 0
      %413 = vmatpush.bf16.msra.mxu0 0
      %414 = vmatpush.bf16.msra.mxu0 0
      %415 = vmatpush.bf16.msra.mxu0 0
      %416 = vmatpush.bf16.msra.mxu0 0
      %417 = vmatpush.bf16.msra.mxu0 %v408
      %418 = vmatmul.bf16.gmra.mxu0 %v405
      %v419 = vpop.f32.mrf.mxu0
      %v420 = vadd.f32 0.0, %v419
      %v421 = vpop.f32.mrf.mxu0
      %422 = vdwg.mxu0
      %v424 = vsel %vm231, %v177, 0
      %v427 = vsel %vm235, %v209, 0
      %429 = vmatpush.bf16.msra.mxu0 0
      %430 = vmatpush.bf16.msra.mxu0 0
      %431 = vmatpush.bf16.msra.mxu0 0
      %432 = vmatpush.bf16.msra.mxu0 0
      %433 = vmatpush.bf16.msra.mxu0 0
      %434 = vmatpush.bf16.msra.mxu0 0
      %435 = vmatpush.bf16.msra.mxu0 0
      %436 = vmatpush.bf16.msra.mxu0 %v427
      %437 = vmatmul.bf16.gmra.mxu0 %v424
      %v438 = vpop.f32.mrf.mxu0
      %v439 = vadd.f32 0.0, %v438
      %v440 = vpop.f32.mrf.mxu0
      %441 = vdwg.mxu0
      %v443 = vsel %vm231, %v178, 0
      %v446 = vsel %vm235, %v210, 0
      %448 = vmatpush.bf16.msra.mxu0 0
      %449 = vmatpush.bf16.msra.mxu0 0
      %450 = vmatpush.bf16.msra.mxu0 0
      %451 = vmatpush.bf16.msra.mxu0 0
      %452 = vmatpush.bf16.msra.mxu0 0
      %453 = vmatpush.bf16.msra.mxu0 0
      %454 = vmatpush.bf16.msra.mxu0 0
      %455 = vmatpush.bf16.msra.mxu0 %v446
      %456 = vmatmul.bf16.gmra.mxu0 %v443
      %v457 = vpop.f32.mrf.mxu0
      %v458 = vadd.f32 0.0, %v457
      %v459 = vpop.f32.mrf.mxu0
      %460 = vdwg.mxu0
      %v462 = vsel %vm231, %v179, 0
      %v465 = vsel %vm235, %v211, 0
      %467 = vmatpush.bf16.msra.mxu0 0
      %468 = vmatpush.bf16.msra.mxu0 0
      %469 = vmatpush.bf16.msra.mxu0 0
      %470 = vmatpush.bf16.msra.mxu0 0
      %471 = vmatpush.bf16.msra.mxu0 0
      %472 = vmatpush.bf16.msra.mxu0 0
      %473 = vmatpush.bf16.msra.mxu0 0
      %474 = vmatpush.bf16.msra.mxu0 %v465
      %475 = vmatmul.bf16.gmra.mxu0 %v462
      %v476 = vpop.f32.mrf.mxu0
      %v477 = vadd.f32 0.0, %v476
      %v478 = vpop.f32.mrf.mxu0
      %479 = vdwg.mxu0
      %v481 = vsel %vm231, %v180, 0
      %v484 = vsel %vm235, %v212, 0
      %486 = vmatpush.bf16.msra.mxu0 0
      %487 = vmatpush.bf16.msra.mxu0 0
      %488 = vmatpush.bf16.msra.mxu0 0
      %489 = vmatpush.bf16.msra.mxu0 0
      %490 = vmatpush.bf16.msra.mxu0 0
      %491 = vmatpush.bf16.msra.mxu0 0
      %492 = vmatpush.bf16.msra.mxu0 0
      %493 = vmatpush.bf16.msra.mxu0 %v484
      %494 = vmatmul.bf16.gmra.mxu0 %v481
      %v495 = vpop.f32.mrf.mxu0
      %v496 = vadd.f32 0.0, %v495
      %v497 = vpop.f32.mrf.mxu0
      %498 = vdwg.mxu0
      %v500 = vsel %vm231, %v181, 0
      %v503 = vsel %vm235, %v213, 0
      %505 = vmatpush.bf16.msra.mxu0 0
      %506 = vmatpush.bf16.msra.mxu0 0
      %507 = vmatpush.bf16.msra.mxu0 0
      %508 = vmatpush.bf16.msra.mxu0 0
      %509 = vmatpush.bf16.msra.mxu0 0
      %510 = vmatpush.bf16.msra.mxu0 0
      %511 = vmatpush.bf16.msra.mxu0 0
      %512 = vmatpush.bf16.msra.mxu0 %v503
      %513 = vmatmul.bf16.gmra.mxu0 %v500
      %v514 = vpop.f32.mrf.mxu0
      %v515 = vadd.f32 0.0, %v514
      %v516 = vpop.f32.mrf.mxu0
      %517 = vdwg.mxu0
      %v519 = vsel %vm231, %v182, 0
      %v522 = vsel %vm235, %v214, 0
      %524 = vmatpush.bf16.msra.mxu0 0
      %525 = vmatpush.bf16.msra.mxu0 0
      %526 = vmatpush.bf16.msra.mxu0 0
      %527 = vmatpush.bf16.msra.mxu0 0
      %528 = vmatpush.bf16.msra.mxu0 0
      %529 = vmatpush.bf16.msra.mxu0 0
      %530 = vmatpush.bf16.msra.mxu0 0
      %531 = vmatpush.bf16.msra.mxu0 %v522
      %532 = vmatmul.bf16.gmra.mxu0 %v519
      %v533 = vpop.f32.mrf.mxu0
      %v534 = vadd.f32 0.0, %v533
      %v535 = vpop.f32.mrf.mxu0
      %536 = vdwg.mxu0
      %v538 = vsel %vm231, %v183, 0
      %v541 = vsel %vm235, %v215, 0
      %543 = vmatpush.bf16.msra.mxu0 0
      %544 = vmatpush.bf16.msra.mxu0 0
      %545 = vmatpush.bf16.msra.mxu0 0
      %546 = vmatpush.bf16.msra.mxu0 0
      %547 = vmatpush.bf16.msra.mxu0 0
      %548 = vmatpush.bf16.msra.mxu0 0
      %549 = vmatpush.bf16.msra.mxu0 0
      %550 = vmatpush.bf16.msra.mxu0 %v541
      %551 = vmatmul.bf16.gmra.mxu0 %v538
      %v552 = vpop.f32.mrf.mxu0
      %v553 = vadd.f32 0.0, %v552
      %v554 = vpop.f32.mrf.mxu0
      %555 = vdwg.mxu0
      %v557 = vsel %vm231, %v184, 0
      %v560 = vsel %vm235, %v216, 0
      %562 = vmatpush.bf16.msra.mxu0 0
      %563 = vmatpush.bf16.msra.mxu0 0
      %564 = vmatpush.bf16.msra.mxu0 0
      %565 = vmatpush.bf16.msra.mxu0 0
      %566 = vmatpush.bf16.msra.mxu0 0
      %567 = vmatpush.bf16.msra.mxu0 0
      %568 = vmatpush.bf16.msra.mxu0 0
      %569 = vmatpush.bf16.msra.mxu0 %v560
      %570 = vmatmul.bf16.gmra.mxu0 %v557
      %v571 = vpop.f32.mrf.mxu0
      %v572 = vadd.f32 0.0, %v571
      %v573 = vpop.f32.mrf.mxu0
      %574 = vdwg.mxu0
      %v576 = vsel %vm231, %v185, 0
      %v579 = vsel %vm235, %v217, 0
      %581 = vmatpush.bf16.msra.mxu0 0
      %582 = vmatpush.bf16.msra.mxu0 0
      %583 = vmatpush.bf16.msra.mxu0 0
      %584 = vmatpush.bf16.msra.mxu0 0
      %585 = vmatpush.bf16.msra.mxu0 0
      %586 = vmatpush.bf16.msra.mxu0 0
      %587 = vmatpush.bf16.msra.mxu0 0
      %588 = vmatpush.bf16.msra.mxu0 %v579
      %589 = vmatmul.bf16.gmra.mxu0 %v576
      %v590 = vpop.f32.mrf.mxu0
      %v591 = vadd.f32 0.0, %v590
      %v592 = vpop.f32.mrf.mxu0
      %593 = vdwg.mxu0
      %v595 = vsel %vm231, %v186, 0
      %v598 = vsel %vm235, %v218, 0
      %600 = vmatpush.bf16.msra.mxu0 0
      %601 = vmatpush.bf16.msra.mxu0 0
      %602 = vmatpush.bf16.msra.mxu0 0
      %603 = vmatpush.bf16.msra.mxu0 0
      %604 = vmatpush.bf16.msra.mxu0 0
      %605 = vmatpush.bf16.msra.mxu0 0
      %606 = vmatpush.bf16.msra.mxu0 0
      %607 = vmatpush.bf16.msra.mxu0 %v598
      %608 = vmatmul.bf16.gmra.mxu0 %v595
      %v609 = vpop.f32.mrf.mxu0
      %v610 = vadd.f32 0.0, %v609
      %v611 = vpop.f32.mrf.mxu0
      %612 = vdwg.mxu0
      %v614 = vsel %vm231, %v187, 0
      %v617 = vsel %vm235, %v219, 0
      %619 = vmatpush.bf16.msra.mxu0 0
      %620 = vmatpush.bf16.msra.mxu0 0
      %621 = vmatpush.bf16.msra.mxu0 0
      %622 = vmatpush.bf16.msra.mxu0 0
      %623 = vmatpush.bf16.msra.mxu0 0
      %624 = vmatpush.bf16.msra.mxu0 0
      %625 = vmatpush.bf16.msra.mxu0 0
      %626 = vmatpush.bf16.msra.mxu0 %v617
      %627 = vmatmul.bf16.gmra.mxu0 %v614
      %v628 = vpop.f32.mrf.mxu0
      %v629 = vadd.f32 0.0, %v628
      %v630 = vpop.f32.mrf.mxu0
      %631 = vdwg.mxu0
      %v633 = vsel %vm231, %v188, 0
      %v636 = vsel %vm235, %v220, 0
      %638 = vmatpush.bf16.msra.mxu0 0
      %639 = vmatpush.bf16.msra.mxu0 0
      %640 = vmatpush.bf16.msra.mxu0 0
      %641 = vmatpush.bf16.msra.mxu0 0
      %642 = vmatpush.bf16.msra.mxu0 0
      %643 = vmatpush.bf16.msra.mxu0 0
      %644 = vmatpush.bf16.msra.mxu0 0
      %645 = vmatpush.bf16.msra.mxu0 %v636
      %646 = vmatmul.bf16.gmra.mxu0 %v633
      %v647 = vpop.f32.mrf.mxu0
      %v648 = vadd.f32 0.0, %v647
      %v649 = vpop.f32.mrf.mxu0
      %650 = vdwg.mxu0
      %v652 = vsel %vm231, %v189, 0
      %v655 = vsel %vm235, %v221, 0
      %657 = vmatpush.bf16.msra.mxu0 0
      %658 = vmatpush.bf16.msra.mxu0 0
      %659 = vmatpush.bf16.msra.mxu0 0
      %660 = vmatpush.bf16.msra.mxu0 0
      %661 = vmatpush.bf16.msra.mxu0 0
      %662 = vmatpush.bf16.msra.mxu0 0
      %663 = vmatpush.bf16.msra.mxu0 0
      %664 = vmatpush.bf16.msra.mxu0 %v655
      %665 = vmatmul.bf16.gmra.mxu0 %v652
      %v666 = vpop.f32.mrf.mxu0
      %v667 = vadd.f32 0.0, %v666
      %v668 = vpop.f32.mrf.mxu0
      %669 = vdwg.mxu0
      %v671 = vsel %vm231, %v190, 0
      %v674 = vsel %vm235, %v222, 0
      %676 = vmatpush.bf16.msra.mxu0 0
      %677 = vmatpush.bf16.msra.mxu0 0
      %678 = vmatpush.bf16.msra.mxu0 0
      %679 = vmatpush.bf16.msra.mxu0 0
      %680 = vmatpush.bf16.msra.mxu0 0
      %681 = vmatpush.bf16.msra.mxu0 0
      %682 = vmatpush.bf16.msra.mxu0 0
      %683 = vmatpush.bf16.msra.mxu0 %v674
      %684 = vmatmul.bf16.gmra.mxu0 %v671
      %v685 = vpop.f32.mrf.mxu0
      %v686 = vadd.f32 0.0, %v685
      %v687 = vpop.f32.mrf.mxu0
      %688 = vdwg.mxu0
      %v690 = vsel %vm231, %v191, 0
      %v693 = vsel %vm235, %v223, 0
      %695 = vmatpush.bf16.msra.mxu0 0
      %696 = vmatpush.bf16.msra.mxu0 0
      %697 = vmatpush.bf16.msra.mxu0 0
      %698 = vmatpush.bf16.msra.mxu0 0
      %699 = vmatpush.bf16.msra.mxu0 0
      %700 = vmatpush.bf16.msra.mxu0 0
      %701 = vmatpush.bf16.msra.mxu0 0
      %702 = vmatpush.bf16.msra.mxu0 %v693
      %703 = vmatmul.bf16.gmra.mxu0 %v690
      %v704 = vpop.f32.mrf.mxu0
      %v705 = vadd.f32 0.0, %v704
      %v706 = vpop.f32.mrf.mxu0
      %707 = vdwg.mxu0
      %v709 = vsel %vm231, %v192, 0
      %v712 = vsel %vm235, %v224, 0
      %714 = vmatpush.bf16.msra.mxu0 0
      %715 = vmatpush.bf16.msra.mxu0 0
      %716 = vmatpush.bf16.msra.mxu0 0
      %717 = vmatpush.bf16.msra.mxu0 0
      %718 = vmatpush.bf16.msra.mxu0 0
      %719 = vmatpush.bf16.msra.mxu0 0
      %720 = vmatpush.bf16.msra.mxu0 0
      %721 = vmatpush.bf16.msra.mxu0 %v712
      %722 = vmatmul.bf16.gmra.mxu0 %v709
      %v723 = vpop.f32.mrf.mxu0
      %v724 = vadd.f32 0.0, %v723
      %v725 = vpop.f32.mrf.mxu0
      %726 = vdwg.mxu0
      %v728 = vsel %vm231, %v193, 0
      %v731 = vsel %vm235, %v225, 0
      %733 = vmatpush.bf16.msra.mxu0 0
      %734 = vmatpush.bf16.msra.mxu0 0
      %735 = vmatpush.bf16.msra.mxu0 0
      %736 = vmatpush.bf16.msra.mxu0 0
      %737 = vmatpush.bf16.msra.mxu0 0
      %738 = vmatpush.bf16.msra.mxu0 0
      %739 = vmatpush.bf16.msra.mxu0 0
      %740 = vmatpush.bf16.msra.mxu0 %v731
      %741 = vmatmul.bf16.gmra.mxu0 %v728
      %v742 = vpop.f32.mrf.mxu0
      %v743 = vadd.f32 0.0, %v742
      %v744 = vpop.f32.mrf.mxu0
      %745 = vdwg.mxu0
      %v747 = vsel %vm231, %v194, 0
      %v750 = vsel %vm235, %v226, 0
      %752 = vmatpush.bf16.msra.mxu0 0
      %753 = vmatpush.bf16.msra.mxu0 0
      %754 = vmatpush.bf16.msra.mxu0 0
      %755 = vmatpush.bf16.msra.mxu0 0
      %756 = vmatpush.bf16.msra.mxu0 0
      %757 = vmatpush.bf16.msra.mxu0 0
      %758 = vmatpush.bf16.msra.mxu0 0
      %759 = vmatpush.bf16.msra.mxu0 %v750
      %760 = vmatmul.bf16.gmra.mxu0 %v747
      %v761 = vpop.f32.mrf.mxu0
      %v762 = vadd.f32 0.0, %v761
      %v763 = vpop.f32.mrf.mxu0
      %764 = vdwg.mxu0
      %v766 = vsel %vm231, %v195, 0
      %v769 = vsel %vm235, %v227, 0
      %771 = vmatpush.bf16.msra.mxu0 0
      %772 = vmatpush.bf16.msra.mxu0 0
      %773 = vmatpush.bf16.msra.mxu0 0
      %774 = vmatpush.bf16.msra.mxu0 0
      %775 = vmatpush.bf16.msra.mxu0 0
      %776 = vmatpush.bf16.msra.mxu0 0
      %777 = vmatpush.bf16.msra.mxu0 0
      %778 = vmatpush.bf16.msra.mxu0 %v769
      %779 = vmatmul.bf16.gmra.mxu0 %v766
      %v780 = vpop.f32.mrf.mxu0
      %v781 = vadd.f32 0.0, %v780
      %v782 = vpop.f32.mrf.mxu0
      %783 = vdwg.mxu0
      %v785 = vsel %vm231, %v196, 0
      %v788 = vsel %vm235, %v228, 0
      %790 = vmatpush.bf16.msra.mxu0 0
      %791 = vmatpush.bf16.msra.mxu0 0
      %792 = vmatpush.bf16.msra.mxu0 0
      %793 = vmatpush.bf16.msra.mxu0 0
      %794 = vmatpush.bf16.msra.mxu0 0
      %795 = vmatpush.bf16.msra.mxu0 0
      %796 = vmatpush.bf16.msra.mxu0 0
      %797 = vmatpush.bf16.msra.mxu0 %v788
      %798 = vmatmul.bf16.gmra.mxu0 %v785
      %v799 = vpop.f32.mrf.mxu0
      %v800 = vadd.f32 0.0, %v799
      %v801 = vpop.f32.mrf.mxu0
      %802 = vdwg.mxu0
      %v804 = vsel %vm231, %v197, 0
      %v807 = vsel %vm235, %v229, 0
      %809 = vmatpush.bf16.msra.mxu0 0
      %810 = vmatpush.bf16.msra.mxu0 0
      %811 = vmatpush.bf16.msra.mxu0 0
      %812 = vmatpush.bf16.msra.mxu0 0
      %813 = vmatpush.bf16.msra.mxu0 0
      %814 = vmatpush.bf16.msra.mxu0 0
      %815 = vmatpush.bf16.msra.mxu0 0
      %816 = vmatpush.bf16.msra.mxu0 %v807
      %817 = vmatmul.bf16.gmra.mxu0 %v804
      %v818 = vpop.f32.mrf.mxu0
      %v819 = vadd.f32 0.0, %v818
      %v820 = vpop.f32.mrf.mxu0
      %821 = vdwg.mxu0
      %v823 = vsel %vm231, %v198, 0
      %v826 = vsel %vm235, %v230, 0
      %828 = vmatpush.bf16.msra.mxu0 0
      %829 = vmatpush.bf16.msra.mxu0 0
      %830 = vmatpush.bf16.msra.mxu0 0
      %831 = vmatpush.bf16.msra.mxu0 0
      %832 = vmatpush.bf16.msra.mxu0 0
      %833 = vmatpush.bf16.msra.mxu0 0
      %834 = vmatpush.bf16.msra.mxu0 0
      %835 = vmatpush.bf16.msra.mxu0 %v826
      %836 = vmatmul.bf16.gmra.mxu0 %v823
      %v837 = vpop.f32.mrf.mxu0
      %v838 = vadd.f32 0.0, %v837
      %v839 = vpop.f32.mrf.mxu0
      %840 = vdwg.mxu0
      %vm841 = vcmask 58368
      %842 = vst.msk [vmem:[%s164] sm:$0x3] %vm841, %v249
      %843 = vst.msk [vmem:[%s164 + $0x2] sm:$0x3] %vm841, %v268
      %844 = vst.msk [vmem:[%s164 + $0x4] sm:$0x3] %vm841, %v287
      %845 = vst.msk [vmem:[%s164 + $0x6] sm:$0x3] %vm841, %v306
      %846 = vst.msk [vmem:[%s164 + $0x8] sm:$0x3] %vm841, %v325
      %847 = vst.msk [vmem:[%s164 + $0xa] sm:$0x3] %vm841, %v344
      %848 = vst.msk [vmem:[%s164 + $0xc] sm:$0x3] %vm841, %v363
      %849 = vst.msk [vmem:[%s164 + $0xe] sm:$0x3] %vm841, %v382
      %850 = vst.msk [vmem:[%s164 + $0x10] sm:$0x3] %vm841, %v401
      %851 = vst.msk [vmem:[%s164 + $0x12] sm:$0x3] %vm841, %v420
      %852 = vst.msk [vmem:[%s164 + $0x14] sm:$0x3] %vm841, %v439
      %853 = vst.msk [vmem:[%s164 + $0x16] sm:$0x3] %vm841, %v458
      %854 = vst.msk [vmem:[%s164 + $0x18] sm:$0x3] %vm841, %v477
      %855 = vst.msk [vmem:[%s164 + $0x1a] sm:$0x3] %vm841, %v496
      %856 = vst.msk [vmem:[%s164 + $0x1c] sm:$0x3] %vm841, %v515
      %857 = vst.msk [vmem:[%s164 + $0x1e] sm:$0x3] %vm841, %v534
      %858 = vst.msk [vmem:[%s164 + $0x20] sm:$0x3] %vm841, %v553
      %859 = vst.msk [vmem:[%s164 + $0x22] sm:$0x3] %vm841, %v572
      %860 = vst.msk [vmem:[%s164 + $0x24] sm:$0x3] %vm841, %v591
      %861 = vst.msk [vmem:[%s164 + $0x26] sm:$0x3] %vm841, %v610
      %862 = vst.msk [vmem:[%s164 + $0x28] sm:$0x3] %vm841, %v629
      %863 = vst.msk [vmem:[%s164 + $0x2a] sm:$0x3] %vm841, %v648
      %864 = vst.msk [vmem:[%s164 + $0x2c] sm:$0x3] %vm841, %v667
      %865 = vst.msk [vmem:[%s164 + $0x2e] sm:$0x3] %vm841, %v686
      %866 = vst.msk [vmem:[%s164 + $0x30] sm:$0x3] %vm841, %v705
      %867 = vst.msk [vmem:[%s164 + $0x32] sm:$0x3] %vm841, %v724
      %868 = vst.msk [vmem:[%s164 + $0x34] sm:$0x3] %vm841, %v743
      %869 = vst.msk [vmem:[%s164 + $0x36] sm:$0x3] %vm841, %v762
      %870 = vst.msk [vmem:[%s164 + $0x38] sm:$0x3] %vm841, %v781
      %871 = vst.msk [vmem:[%s164 + $0x3a] sm:$0x3] %vm841, %v800
      %872 = vst.msk [vmem:[%s164 + $0x3c] sm:$0x3] %vm841, %v819
      %873 = vst.msk [vmem:[%s164 + $0x3e] sm:$0x3] %vm841, %v838
      %s874 = smul.u32 32, %s13
      %p875 = scmp.lt.s32.totalorder %s874, 63
      %s876 = scalar_select %p875, %s874, 63
      %s877 = smul.addr %s876, 2
      %s878 = scalar_lea.vmem %s2, %s877
      // Predicated region
      $region29: #{tpu_custom_call.1} parent=27 // pred_check
        %p879 = pneg %p83
      $region30: #{tpu_custom_call.1} parent=27 // pred_check_branch
        %881 = sbr.rel (%p879) target = $region32
      $region31: #{tpu_custom_call.1} parent=27 // pred_region
        %s882 = smul.u32 32, %s13
      $region32: #{tpu_custom_call.1} parent=27 // pred_fallthru
        _
    $region28: #{tpu_custom_call.1} parent=5 // pred_fallthru
      _
    %p883 = scmp.le.s32.totalorder 2, %s8
    // Predicated region
    $region33: #{tpu_custom_call.1} parent=5 // pred_check
      %p884 = pneg %p883
    $region34: #{tpu_custom_call.1} parent=5 // pred_check_branch
      %886 = sbr.rel (%p884) target = $region36
    $region35: #{tpu_custom_call.1} parent=5 // pred_region
      %s887 = ssub.s32 %s8, 2
      // Predicated region
      $region37: #{tpu_custom_call.1} parent=35 // pred_check
        %p888 = pneg %p89
      $region38: #{tpu_custom_call.1} parent=35 // pred_check_branch
        %890 = sbr.rel (%p888) target = $region40
      $region39: #{tpu_custom_call.1} parent=35 // pred_region
        %s891 = smul.u32 32, %s14
        %p892 = scmp.lt.s32.totalorder %s891, 63
        %s893 = scalar_select %p892, %s891, 63
        %s894 = smul.addr %s893, 2
        %s895 = scalar_lea.vmem %s2, %s894
      $region40: #{tpu_custom_call.1} parent=35 // pred_fallthru
        _
    $region36: #{tpu_custom_call.1} parent=5 // pred_fallthru
      _
  $region6: #{tpu_custom_call.1} parent=0 // loop_footer
    %s12 = sadd.s32 1, %s8
  $region7: #{tpu_custom_call.1} parent=0 // loop_footer_branch
    %7 = sbr.rel target = $region3
  $region8: #{tpu_custom_call.1} parent=0 // loop_exit
    _

</llo_original>
